<compile_context>
chip_gen: v5e
topology: v5e:2x2
jax: 0.10.0
libtpu: 0.0.40
codegen_flags: <defaults>
</compile_context>

<pallas_src>
import math

import jax
import jax.numpy as jnp
from jax.experimental import pallas as pl
from jax.experimental.pallas import tpu as pltpu


# ----------------------------------------------------------------------------
# Kernel builder
# ----------------------------------------------------------------------------
def _make_tcn_encoder_kernel(*, nb_blocks, has_downsample, kernel_size,
                             dilations, seq_len, samples_per_step,
                             latent_channels):
    k = kernel_size
    L = seq_len
    Bt = samples_per_step
    N = Bt * L
    c_lat = latent_channels

    def kernel(*refs):
        idx = 0
        x_ref = refs[idx]; idx += 1
        block_refs = []
        for i in range(nb_blocks):
            n = 6 if has_downsample[i] else 4
            block_refs.append(refs[idx:idx + n])
            idx += n
        w_head_ref = refs[idx]; idx += 1          # (c_lat, N, Bt*2*LD) bf16
        b_head_ref = refs[idx]; idx += 1          # (1, Bt*2*LD) f32
        out_ref = refs[idx]                       # (1, Bt*2*LD)

        h = x_ref[...]                            # (C0+1, Bt*L) f32

        # Hoisted per-shift causal masks (lane-local time index >= shift).
        lane_local = jax.lax.broadcasted_iota(jnp.int32, (1, N), 1) % L
        all_shifts = sorted({(k - 1 - kk) * d for d in dilations
                             for kk in range(k)} - {0})
        masks = {s: lane_local >= s for s in all_shifts if s < L}

        def shifted(h_in, shift):
            # shifted[c, p] = h_in[c, p - shift] if (p % L) >= shift else 0
            if shift == 0:
                return h_in
            if shift >= L:                        # fully outside the causal window
                return jnp.zeros_like(h_in)
            rolled = jnp.concatenate(
                [h_in[:, N - shift:], h_in[:, :N - shift]], axis=1)
            return jnp.where(masks[shift], rolled, 0.0)

        def causal_conv(h_in, w_ref, b_ref, d):
            # w_ref: (C_out, k*C_in) bf16 (taps pre-folded), b_ref: (C_out, 1) f32
            parts = [shifted(h_in, (k - 1 - kk) * d) for kk in range(k)]
            stacked = jnp.concatenate(parts, axis=0).astype(jnp.bfloat16)
            out = jnp.dot(w_ref[...], stacked, preferred_element_type=jnp.float32)
            return out + b_ref[...]

        # --- TCN blocks -------------------------------------------------------
        for i in range(nb_blocks):
            d = dilations[i]
            if has_downsample[i]:
                w1, b1, w2, b2, wd, bd = block_refs[i]
                res = jnp.dot(wd[...], h.astype(jnp.bfloat16),
                              preferred_element_type=jnp.float32) + bd[...]
            else:
                w1, b1, w2, b2 = block_refs[i]
                res = h
            # TODO(synk): nn.Dropout is identity at inference and is not applied here.
            out = jnp.maximum(causal_conv(h, w1, b1, d), 0.0)
            out = jnp.maximum(causal_conv(out, w2, b2, d), 0.0)
            h = jnp.maximum(out + res, 0.0)

        # --- fused AvgPool + flatten + (mu, log_var) heads ----------------------
        # Pool matrix is folded into w_head at prepare time; w_head[c] is the
        # block-diagonal (over Bt samples) per-channel weight (Bt*L, Bt*2*LD).
        y = b_head_ref[...]                       # (1, Bt*2*LD) f32
        for c in range(c_lat):
            row = h[c:c + 1, :].astype(jnp.bfloat16)     # (1, Bt*L)
            y = y + jnp.dot(row, w_head_ref[c],
                            preferred_element_type=jnp.float32)
        out_ref[...] = y.astype(out_ref.dtype)

    return kernel


# ----------------------------------------------------------------------------
# Wrapper
# ----------------------------------------------------------------------------
def tcn_encoder_forward(x, labels, params, *, kernel_size, stride, dilatation,
                        avgpoolnum):
    """x: (B, C0, L) f32, labels: (B, 1, L) f32 -> (mu, log_var) each (B, latent_dim)."""
    assert stride == 1, "TODO(synk): stride != 1 not supported (standard TCN uses 1)."
    B, c0, L = x.shape
    C = c0 + labels.shape[1]
    blocks = params["blocks"]
    nb_blocks = len(blocks)
    c_lat = blocks[0]["w1"].shape[1]
    LD = params["w_mu"].shape[0]
    pool = avgpoolnum
    assert L % pool == 0
    Lp = L // pool
    two_ld = 2 * LD
    k = kernel_size
    dilations = [dilatation ** i for i in range(nb_blocks)]
    has_ds = [blk["wd"] is not None for blk in blocks]

    f32, bf16 = jnp.float32, jnp.bfloat16

    # ---- samples-per-step (lane packing) ------------------------------------
    # Fill the lane axis; keep Bt*L a multiple of 128 whenever grid > 1 and cap
    # the (Bt^2-scaled) folded head weight so the working set stays well under
    # VMEM even on v7x (64 MiB physical).
    if B * L <= 1024:
        Bt = B
    else:
        Bt = math.lcm(L, 128) // L
        while ((Bt * 2) * L <= 1024 and
               2 * c_lat * (2 * Bt * L) * (2 * Bt * two_ld) <= (4 << 20)):
            Bt *= 2
    B_pad = ((B + Bt - 1) // Bt) * Bt
    steps = B_pad // Bt
    N = Bt * L

    # ---- input: concat channels, pad batch, pack batch into lanes -----------
    xl = jnp.concatenate([x, labels], axis=1).astype(f32)          # (B, C, L)
    if B_pad != B:
        xl = jnp.concatenate(
            [xl, jnp.zeros((B_pad - B, C, L), f32)], axis=0)
    xl_packed = jnp.transpose(xl, (1, 0, 2)).reshape(C, B_pad * L)  # (C, B_pad*L)

    def resident(arr):   # full-array block, resident across the grid
        zeros = (0,) * arr.ndim
        return pl.BlockSpec(arr.shape, lambda i, _z=zeros: _z)

    def widen(w):        # (k, C_out, C_in) -> (C_out, k*C_in), taps folded
        kk, co, ci = w.shape
        return jnp.transpose(w, (1, 0, 2)).reshape(co, kk * ci)

    inputs = [xl_packed]
    in_specs = [pl.BlockSpec((C, N), lambda i: (0, i))]

    for i, blk in enumerate(blocks):
        ents = [widen(blk["w1"]).astype(bf16), blk["b1"].astype(f32),
                widen(blk["w2"]).astype(bf16), blk["b2"].astype(f32)]
        if has_ds[i]:
            ents += [blk["wd"].astype(bf16), blk["bd"].astype(f32)]
        for a in ents:
            inputs.append(a)
            in_specs.append(resident(a))

    # ---- fold AvgPool + flatten + both dense heads into one resident weight --
    # mu/lv[o] = sum_{c,t} W_eff[o,c,t] * h[c,t],  W_eff[o,c,t] = w[o, c*Lp + t//pool]/pool
    w_cat = jnp.concatenate([params["w_mu"], params["w_lv"]], axis=0)   # (2LD, dense)
    w_eff = jnp.repeat(w_cat.reshape(two_ld, c_lat, Lp), pool, axis=2) / pool
    w_ch = jnp.transpose(w_eff, (1, 2, 0))                              # (c_lat, L, 2LD)
    eye = jnp.eye(Bt, dtype=f32)
    # block-diagonal over the Bt lane-packed samples: (c_lat, Bt*L, Bt*2LD)
    w_head = (eye[None, :, None, :, None] * w_ch[:, None, :, None, :]
              ).reshape(c_lat, Bt * L, Bt * two_ld).astype(bf16)
    b_cat = jnp.concatenate([params["b_mu"].reshape(-1),
                             params["b_lv"].reshape(-1)])
    b_head = jnp.tile(b_cat, Bt)[None, :].astype(f32)                   # (1, Bt*2LD)
    inputs += [w_head, b_head]
    in_specs += [resident(w_head), resident(b_head)]

    kernel = _make_tcn_encoder_kernel(
        nb_blocks=nb_blocks, has_downsample=has_ds, kernel_size=k,
        dilations=dilations, seq_len=L, samples_per_step=Bt,
        latent_channels=c_lat)

    out = pl.pallas_call(
        kernel,
        out_shape=jax.ShapeDtypeStruct((steps, Bt * two_ld), f32),
        grid=(steps,),
        in_specs=in_specs,
        out_specs=pl.BlockSpec((1, Bt * two_ld), lambda i: (i, 0)),
        compiler_params=pltpu.CompilerParams(
            dimension_semantics=("parallel",),
            vmem_limit_bytes=32 * 1024 * 1024),
    )(*inputs)

    out = out.reshape(B_pad, two_ld)[:B]
    return out[:, :LD], out[:, LD:]


# ----------------------------------------------------------------------------
# Parameter init (kernel-friendly layouts chosen ONCE here, not per call)
# ----------------------------------------------------------------------------
def init_tcn_encoder_params(key, *, initial_channels, latent_channels, latent_dim,
                            kernel_size, nb_blocks, seq_len, avgpoolnum):
    c_in = initial_channels + 1                        # +1 label channel
    dense_dim = latent_channels * seq_len // avgpoolnum
    keys = iter(jax.random.split(key, 6 * nb_blocks + 4))

    def rnd(shape, scale):
        return jax.random.normal(next(keys), shape, jnp.float32) * scale

    blocks = []
    prev = c_in
    for _ in range(nb_blocks):
        s1 = 1.0 / (prev * kernel_size) ** 0.5
        s2 = 1.0 / (latent_channels * kernel_size) ** 0.5
        blk = {
            # Conv weights stored once in (k, C_out, C_in) layout.
            "w1": rnd((kernel_size, latent_channels, prev), s1),
            "b1": rnd((latent_channels, 1), s1),
            "w2": rnd((kernel_size, latent_channels, latent_channels), s2),
            "b2": rnd((latent_channels, 1), s2),
        }
        if prev != latent_channels:
            sd = 1.0 / prev ** 0.5
            blk["wd"] = rnd((latent_channels, prev), sd)    # 1x1 downsample conv
            blk["bd"] = rnd((latent_channels, 1), sd)
        else:
            blk["wd"] = None
            blk["bd"] = None
            _ = next(keys); _ = next(keys)                  # keep key count fixed
        blocks.append(blk)
        prev = latent_channels

    sd = 1.0 / dense_dim ** 0.5
    return {
        "blocks": blocks,
        "w_mu": rnd((latent_dim, dense_dim), sd),           # PyTorch Linear layout
        "b_mu": rnd((1, latent_dim), sd),
        "w_lv": rnd((latent_dim, dense_dim), sd),
        "b_lv": rnd((1, latent_dim), sd),
    }


# ----------------------------------------------------------------------------
# Pure-JAX reference (independent path: XLA dilated conv, f32)
# ----------------------------------------------------------------------------
def tcn_encoder_reference(x, labels, params, *, kernel_size, dilatation, avgpoolnum):
    hi = jax.lax.Precision.HIGHEST
    h = jnp.concatenate([x, labels], axis=1)
    for i, blk in enumerate(params["blocks"]):
        d = dilatation ** i
        pad = (kernel_size - 1) * d

        def conv(inp, w_koi, b):
            w_oik = jnp.transpose(w_koi, (1, 2, 0))          # (O, I, k)
            out = jax.lax.conv_general_dilated(
                inp, w_oik, window_strides=(1,), padding=[(pad, 0)],
                rhs_dilation=(d,), dimension_numbers=("NCH", "OIH", "NCH"),
                precision=hi)
            return out + b.reshape(1, -1, 1)

        out = jax.nn.relu(conv(h, blk["w1"], blk["b1"]))
        out = jax.nn.relu(conv(out, blk["w2"], blk["b2"]))
        if blk["wd"] is not None:
            res = jnp.einsum("oi,bil->bol", blk["wd"], h, precision=hi)
            res = res + blk["bd"].reshape(1, -1, 1)
        else:
            res = h
        h = jax.nn.relu(out + res)
    B, C, L = h.shape
    p = avgpoolnum
    pooled = h.reshape(B, C, L // p, p).mean(axis=-1)
    flat = pooled.reshape(B, -1)
    mu = jnp.dot(flat, params["w_mu"].T, precision=hi) + params["b_mu"].reshape(-1)
    lv = jnp.dot(flat, params["w_lv"].T, precision=hi) + params["b_lv"].reshape(-1)
    return mu, lv


# ----------------------------------------------------------------------------
# Demo / self-check
# ----------------------------------------------------------------------------
if __name__ == "__main__":
    key = jax.random.PRNGKey(0)
    k_param, k_x, k_lab = jax.random.split(key, 3)

    B = 2
    initial_channels = 4
    latent_channels = 8
    latent_dim = 16
    kernel_size = 3
    stride = 1
    dilatation = 2
    nb_blocks = 2
    avgpoolnum = 4
    seq_len = 16

    params = init_tcn_encoder_params(
        k_param, initial_channels=initial_channels,
        latent_channels=latent_channels, latent_dim=latent_dim,
        kernel_size=kernel_size, nb_blocks=nb_blocks, seq_len=seq_len,
        avgpoolnum=avgpoolnum)

    x = jax.random.normal(k_x, (B, initial_channels, seq_len), jnp.float32)
    labels = jax.random.normal(k_lab, (B, 1, seq_len), jnp.float32)

    mu, log_var = tcn_encoder_forward(
        x, labels, params, kernel_size=kernel_size, stride=stride,
        dilatation=dilatation, avgpoolnum=avgpoolnum)
    jax.block_until_ready((mu, log_var))

    mu_ref, lv_ref = tcn_encoder_reference(
        x, labels, params, kernel_size=kernel_size, dilatation=dilatation,
        avgpoolnum=avgpoolnum)

    assert mu.shape == (B, latent_dim) and log_var.shape == (B, latent_dim)
    # Tolerance loosened vs. the pure-f32 version: MXU operands are bf16.
    assert jnp.allclose(mu, mu_ref, atol=5e-2, rtol=5e-2), "mu mismatch"
    assert jnp.allclose(log_var, lv_ref, atol=5e-2, rtol=5e-2), "log_var mismatch"

    print("KERNEL_OK")
</pallas_src>

<mosaic_0001>
module attributes {stable_mosaic.version = 11 : i64} {
  func.func @kernel(%arg0: i32, %arg1: memref<5x32xf32, #tpu.memory_space<vmem>>, %arg2: memref<8x15xbf16, #tpu.memory_space<vmem>>, %arg3: memref<8x1xf32, #tpu.memory_space<vmem>>, %arg4: memref<8x24xbf16, #tpu.memory_space<vmem>>, %arg5: memref<8x1xf32, #tpu.memory_space<vmem>>, %arg6: memref<8x5xbf16, #tpu.memory_space<vmem>>, %arg7: memref<8x1xf32, #tpu.memory_space<vmem>>, %arg8: memref<8x24xbf16, #tpu.memory_space<vmem>>, %arg9: memref<8x1xf32, #tpu.memory_space<vmem>>, %arg10: memref<8x24xbf16, #tpu.memory_space<vmem>>, %arg11: memref<8x1xf32, #tpu.memory_space<vmem>>, %arg12: memref<8x32x64xbf16, #tpu.memory_space<vmem>>, %arg13: memref<1x64xf32, #tpu.memory_space<vmem>>, %arg14: memref<1x64xf32, #tpu.memory_space<vmem>>) attributes {dimension_semantics = [#tpu.dimension_semantics<parallel>], iteration_bounds = array<i64: 1>, scalar_prefetch = 0 : i64, scratch_operands = 0 : i64, tpu.core_type = #tpu.core_type<tc>, window_params = [{transform_indices = @transform_0, window_bounds = array<i64: 5, 32>}, {pipeline_mode = #tpu.pipeline_mode<synchronous>, transform_indices = @transform_1, window_bounds = array<i64: 8, 15>}, {pipeline_mode = #tpu.pipeline_mode<synchronous>, transform_indices = @transform_2, window_bounds = array<i64: 8, 1>}, {pipeline_mode = #tpu.pipeline_mode<synchronous>, transform_indices = @transform_3, window_bounds = array<i64: 8, 24>}, {pipeline_mode = #tpu.pipeline_mode<synchronous>, transform_indices = @transform_4, window_bounds = array<i64: 8, 1>}, {pipeline_mode = #tpu.pipeline_mode<synchronous>, transform_indices = @transform_5, window_bounds = array<i64: 8, 5>}, {pipeline_mode = #tpu.pipeline_mode<synchronous>, transform_indices = @transform_6, window_bounds = array<i64: 8, 1>}, {pipeline_mode = #tpu.pipeline_mode<synchronous>, transform_indices = @transform_7, window_bounds = array<i64: 8, 24>}, {pipeline_mode = #tpu.pipeline_mode<synchronous>, transform_indices = @transform_8, window_bounds = array<i64: 8, 1>}, {pipeline_mode = #tpu.pipeline_mode<synchronous>, transform_indices = @transform_9, window_bounds = array<i64: 8, 24>}, {pipeline_mode = #tpu.pipeline_mode<synchronous>, transform_indices = @transform_10, window_bounds = array<i64: 8, 1>}, {pipeline_mode = #tpu.pipeline_mode<synchronous>, transform_indices = @transform_11, window_bounds = array<i64: 8, 32, 64>}, {pipeline_mode = #tpu.pipeline_mode<synchronous>, transform_indices = @transform_12, window_bounds = array<i64: 1, 64>}, {transform_indices = @transform_13, window_bounds = array<i64: 1, 64>}]} {
    %c0 = arith.constant 0 : index
    %c0_0 = arith.constant 0 : index
    %0 = vector.load %arg1[%c0, %c0_0] : memref<5x32xf32, #tpu.memory_space<vmem>>, vector<5x32xf32>
    %1 = tpu.iota {dimensions = array<i32: 1>} : vector<1x32xi32>
    %c16_i32 = arith.constant 16 : i32
    %c0_i32 = arith.constant 0 : i32
    %2 = arith.cmpi eq, %c16_i32, %c0_i32 : i32
    %c1_i32 = arith.constant 1 : i32
    %3 = arith.select %2, %c1_i32, %c16_i32 : i32
    %4 = vector.broadcast %3 : i32 to vector<1x32xi32>
    %5 = arith.remsi %1, %4 : vector<1x32xi32>
    %c0_i32_1 = arith.constant 0 : i32
    %6 = vector.broadcast %c0_i32_1 : i32 to vector<1x32xi32>
    %7 = arith.cmpi ne, %5, %6 : vector<1x32xi32>
    %c0_i32_2 = arith.constant 0 : i32
    %8 = vector.broadcast %c0_i32_2 : i32 to vector<1x32xi32>
    %9 = arith.cmpi slt, %5, %8 : vector<1x32xi32>
    %c0_i32_3 = arith.constant 0 : i32
    %10 = arith.cmpi slt, %3, %c0_i32_3 : i32
    %11 = vector.broadcast %10 : i1 to vector<1x32xi1>
    %12 = vector.broadcast %11 : vector<1x32xi1> to vector<1x32xi1>
    %13 = arith.xori %9, %12 : vector<1x32xi1>
    %14 = arith.andi %13, %7 : vector<1x32xi1>
    %15 = vector.broadcast %3 : i32 to vector<1x32xi32>
    %16 = arith.addi %5, %15 : vector<1x32xi32>
    %17 = arith.select %14, %16, %5 : vector<1x32xi1>, vector<1x32xi32>
    %c1_i32_4 = arith.constant 1 : i32
    %18 = vector.broadcast %c1_i32_4 : i32 to vector<1x32xi32>
    %19 = arith.cmpi sge, %17, %18 : vector<1x32xi32>
    %c2_i32 = arith.constant 2 : i32
    %20 = vector.broadcast %c2_i32 : i32 to vector<1x32xi32>
    %21 = arith.cmpi sge, %17, %20 : vector<1x32xi32>
    %c4_i32 = arith.constant 4 : i32
    %22 = vector.broadcast %c4_i32 : i32 to vector<1x32xi32>
    %23 = arith.cmpi sge, %17, %22 : vector<1x32xi32>
    %c0_5 = arith.constant 0 : index
    %c0_6 = arith.constant 0 : index
    %24 = vector.load %arg6[%c0_5, %c0_6] : memref<8x5xbf16, #tpu.memory_space<vmem>>, vector<8x5xbf16>
    %25 = arith.truncf %0 : vector<5x32xf32> to vector<5x32xbf16>
    %cst = arith.constant dense<0.000000e+00> : vector<8x32xf32>
    %26 = tpu.matmul %24, %25, %cst {dimension_numbers = #tpu.dot_dimension_numbers<[1], [0], [0], [1], [0, 0, 1, 1], [], []>} : vector<8x5xbf16>, vector<5x32xbf16>, vector<8x32xf32> -> vector<8x32xf32>
    %c0_7 = arith.constant 0 : index
    %c0_8 = arith.constant 0 : index
    %27 = vector.load %arg7[%c0_7, %c0_8] : memref<8x1xf32, #tpu.memory_space<vmem>>, vector<8x1xf32>
    %28 = vector.broadcast %27 : vector<8x1xf32> to vector<8x32xf32>
    %29 = arith.addf %26, %28 : vector<8x32xf32>
    %30 = vector.extract_strided_slice %0 {offsets = [0, 30], sizes = [5, 2], strides = [1, 1]} : vector<5x32xf32> to vector<5x2xf32>
    %31 = vector.extract_strided_slice %0 {offsets = [0, 0], sizes = [5, 30], strides = [1, 1]} : vector<5x32xf32> to vector<5x30xf32>
    %32 = tpu.concatenate %30, %31 in 1 : vector<5x2xf32>, vector<5x30xf32> -> vector<5x32xf32>
    %cst_9 = arith.constant 0.000000e+00 : f32
    %33 = vector.shape_cast %21 : vector<1x32xi1> to vector<1x32xi1>
    %34 = vector.broadcast %33 : vector<1x32xi1> to vector<5x32xi1>
    %35 = vector.broadcast %cst_9 : f32 to vector<5x32xf32>
    %36 = arith.select %34, %32, %35 : vector<5x32xi1>, vector<5x32xf32>
    %37 = vector.extract_strided_slice %0 {offsets = [0, 31], sizes = [5, 1], strides = [1, 1]} : vector<5x32xf32> to vector<5x1xf32>
    %38 = vector.extract_strided_slice %0 {offsets = [0, 0], sizes = [5, 31], strides = [1, 1]} : vector<5x32xf32> to vector<5x31xf32>
    %39 = tpu.concatenate %37, %38 in 1 : vector<5x1xf32>, vector<5x31xf32> -> vector<5x32xf32>
    %cst_10 = arith.constant 0.000000e+00 : f32
    %40 = vector.shape_cast %19 : vector<1x32xi1> to vector<1x32xi1>
    %41 = vector.broadcast %40 : vector<1x32xi1> to vector<5x32xi1>
    %42 = vector.broadcast %cst_10 : f32 to vector<5x32xf32>
    %43 = arith.select %41, %39, %42 : vector<5x32xi1>, vector<5x32xf32>
    %44 = tpu.concatenate %36, %43, %0 in 0 : vector<5x32xf32>, vector<5x32xf32>, vector<5x32xf32> -> vector<15x32xf32>
    %45 = arith.truncf %44 : vector<15x32xf32> to vector<15x32xbf16>
    %c0_11 = arith.constant 0 : index
    %c0_12 = arith.constant 0 : index
    %46 = vector.load %arg2[%c0_11, %c0_12] : memref<8x15xbf16, #tpu.memory_space<vmem>>, vector<8x15xbf16>
    %cst_13 = arith.constant dense<0.000000e+00> : vector<8x32xf32>
    %47 = tpu.matmul %46, %45, %cst_13 {dimension_numbers = #tpu.dot_dimension_numbers<[1], [0], [0], [1], [0, 0, 1, 1], [], []>} : vector<8x15xbf16>, vector<15x32xbf16>, vector<8x32xf32> -> vector<8x32xf32>
    %c0_14 = arith.constant 0 : index
    %c0_15 = arith.constant 0 : index
    %48 = vector.load %arg3[%c0_14, %c0_15] : memref<8x1xf32, #tpu.memory_space<vmem>>, vector<8x1xf32>
    %49 = vector.broadcast %48 : vector<8x1xf32> to vector<8x32xf32>
    %50 = arith.addf %47, %49 : vector<8x32xf32>
    %cst_16 = arith.constant 0.000000e+00 : f32
    %51 = vector.broadcast %cst_16 : f32 to vector<8x32xf32>
    %52 = arith.maximumf %50, %51 : vector<8x32xf32>
    %53 = vector.extract_strided_slice %52 {offsets = [0, 30], sizes = [8, 2], strides = [1, 1]} : vector<8x32xf32> to vector<8x2xf32>
    %54 = vector.extract_strided_slice %52 {offsets = [0, 0], sizes = [8, 30], strides = [1, 1]} : vector<8x32xf32> to vector<8x30xf32>
    %55 = tpu.concatenate %53, %54 in 1 : vector<8x2xf32>, vector<8x30xf32> -> vector<8x32xf32>
    %cst_17 = arith.constant 0.000000e+00 : f32
    %56 = vector.shape_cast %21 : vector<1x32xi1> to vector<1x32xi1>
    %57 = vector.broadcast %56 : vector<1x32xi1> to vector<8x32xi1>
    %58 = vector.broadcast %cst_17 : f32 to vector<8x32xf32>
    %59 = arith.select %57, %55, %58 : vector<8x32xi1>, vector<8x32xf32>
    %60 = vector.extract_strided_slice %52 {offsets = [0, 31], sizes = [8, 1], strides = [1, 1]} : vector<8x32xf32> to vector<8x1xf32>
    %61 = vector.extract_strided_slice %52 {offsets = [0, 0], sizes = [8, 31], strides = [1, 1]} : vector<8x32xf32> to vector<8x31xf32>
    %62 = tpu.concatenate %60, %61 in 1 : vector<8x1xf32>, vector<8x31xf32> -> vector<8x32xf32>
    %cst_18 = arith.constant 0.000000e+00 : f32
    %63 = vector.shape_cast %19 : vector<1x32xi1> to vector<1x32xi1>
    %64 = vector.broadcast %63 : vector<1x32xi1> to vector<8x32xi1>
    %65 = vector.broadcast %cst_18 : f32 to vector<8x32xf32>
    %66 = arith.select %64, %62, %65 : vector<8x32xi1>, vector<8x32xf32>
    %67 = tpu.concatenate %59, %66, %52 in 0 : vector<8x32xf32>, vector<8x32xf32>, vector<8x32xf32> -> vector<24x32xf32>
    %68 = arith.truncf %67 : vector<24x32xf32> to vector<24x32xbf16>
    %c0_19 = arith.constant 0 : index
    %c0_20 = arith.constant 0 : index
    %69 = vector.load %arg4[%c0_19, %c0_20] : memref<8x24xbf16, #tpu.memory_space<vmem>>, vector<8x24xbf16>
    %cst_21 = arith.constant dense<0.000000e+00> : vector<8x32xf32>
    %70 = tpu.matmul %69, %68, %cst_21 {dimension_numbers = #tpu.dot_dimension_numbers<[1], [0], [0], [1], [0, 0, 1, 1], [], []>} : vector<8x24xbf16>, vector<24x32xbf16>, vector<8x32xf32> -> vector<8x32xf32>
    %c0_22 = arith.constant 0 : index
    %c0_23 = arith.constant 0 : index
    %71 = vector.load %arg5[%c0_22, %c0_23] : memref<8x1xf32, #tpu.memory_space<vmem>>, vector<8x1xf32>
    %72 = vector.broadcast %71 : vector<8x1xf32> to vector<8x32xf32>
    %73 = arith.addf %70, %72 : vector<8x32xf32>
    %cst_24 = arith.constant 0.000000e+00 : f32
    %74 = vector.broadcast %cst_24 : f32 to vector<8x32xf32>
    %75 = arith.maximumf %73, %74 : vector<8x32xf32>
    %76 = arith.addf %75, %29 : vector<8x32xf32>
    %cst_25 = arith.constant 0.000000e+00 : f32
    %77 = vector.broadcast %cst_25 : f32 to vector<8x32xf32>
    %78 = arith.maximumf %76, %77 : vector<8x32xf32>
    %79 = vector.extract_strided_slice %78 {offsets = [0, 28], sizes = [8, 4], strides = [1, 1]} : vector<8x32xf32> to vector<8x4xf32>
    %80 = vector.extract_strided_slice %78 {offsets = [0, 0], sizes = [8, 28], strides = [1, 1]} : vector<8x32xf32> to vector<8x28xf32>
    %81 = tpu.concatenate %79, %80 in 1 : vector<8x4xf32>, vector<8x28xf32> -> vector<8x32xf32>
    %cst_26 = arith.constant 0.000000e+00 : f32
    %82 = vector.shape_cast %23 : vector<1x32xi1> to vector<1x32xi1>
    %83 = vector.broadcast %82 : vector<1x32xi1> to vector<8x32xi1>
    %84 = vector.broadcast %cst_26 : f32 to vector<8x32xf32>
    %85 = arith.select %83, %81, %84 : vector<8x32xi1>, vector<8x32xf32>
    %86 = vector.extract_strided_slice %78 {offsets = [0, 30], sizes = [8, 2], strides = [1, 1]} : vector<8x32xf32> to vector<8x2xf32>
    %87 = vector.extract_strided_slice %78 {offsets = [0, 0], sizes = [8, 30], strides = [1, 1]} : vector<8x32xf32> to vector<8x30xf32>
    %88 = tpu.concatenate %86, %87 in 1 : vector<8x2xf32>, vector<8x30xf32> -> vector<8x32xf32>
    %cst_27 = arith.constant 0.000000e+00 : f32
    %89 = vector.shape_cast %21 : vector<1x32xi1> to vector<1x32xi1>
    %90 = vector.broadcast %89 : vector<1x32xi1> to vector<8x32xi1>
    %91 = vector.broadcast %cst_27 : f32 to vector<8x32xf32>
    %92 = arith.select %90, %88, %91 : vector<8x32xi1>, vector<8x32xf32>
    %93 = tpu.concatenate %85, %92, %78 in 0 : vector<8x32xf32>, vector<8x32xf32>, vector<8x32xf32> -> vector<24x32xf32>
    %94 = arith.truncf %93 : vector<24x32xf32> to vector<24x32xbf16>
    %c0_28 = arith.constant 0 : index
    %c0_29 = arith.constant 0 : index
    %95 = vector.load %arg8[%c0_28, %c0_29] : memref<8x24xbf16, #tpu.memory_space<vmem>>, vector<8x24xbf16>
    %cst_30 = arith.constant dense<0.000000e+00> : vector<8x32xf32>
    %96 = tpu.matmul %95, %94, %cst_30 {dimension_numbers = #tpu.dot_dimension_numbers<[1], [0], [0], [1], [0, 0, 1, 1], [], []>} : vector<8x24xbf16>, vector<24x32xbf16>, vector<8x32xf32> -> vector<8x32xf32>
    %c0_31 = arith.constant 0 : index
    %c0_32 = arith.constant 0 : index
    %97 = vector.load %arg9[%c0_31, %c0_32] : memref<8x1xf32, #tpu.memory_space<vmem>>, vector<8x1xf32>
    %98 = vector.broadcast %97 : vector<8x1xf32> to vector<8x32xf32>
    %99 = arith.addf %96, %98 : vector<8x32xf32>
    %cst_33 = arith.constant 0.000000e+00 : f32
    %100 = vector.broadcast %cst_33 : f32 to vector<8x32xf32>
    %101 = arith.maximumf %99, %100 : vector<8x32xf32>
    %102 = vector.extract_strided_slice %101 {offsets = [0, 28], sizes = [8, 4], strides = [1, 1]} : vector<8x32xf32> to vector<8x4xf32>
    %103 = vector.extract_strided_slice %101 {offsets = [0, 0], sizes = [8, 28], strides = [1, 1]} : vector<8x32xf32> to vector<8x28xf32>
    %104 = tpu.concatenate %102, %103 in 1 : vector<8x4xf32>, vector<8x28xf32> -> vector<8x32xf32>
    %cst_34 = arith.constant 0.000000e+00 : f32
    %105 = vector.shape_cast %23 : vector<1x32xi1> to vector<1x32xi1>
    %106 = vector.broadcast %105 : vector<1x32xi1> to vector<8x32xi1>
    %107 = vector.broadcast %cst_34 : f32 to vector<8x32xf32>
    %108 = arith.select %106, %104, %107 : vector<8x32xi1>, vector<8x32xf32>
    %109 = vector.extract_strided_slice %101 {offsets = [0, 30], sizes = [8, 2], strides = [1, 1]} : vector<8x32xf32> to vector<8x2xf32>
    %110 = vector.extract_strided_slice %101 {offsets = [0, 0], sizes = [8, 30], strides = [1, 1]} : vector<8x32xf32> to vector<8x30xf32>
    %111 = tpu.concatenate %109, %110 in 1 : vector<8x2xf32>, vector<8x30xf32> -> vector<8x32xf32>
    %cst_35 = arith.constant 0.000000e+00 : f32
    %112 = vector.shape_cast %21 : vector<1x32xi1> to vector<1x32xi1>
    %113 = vector.broadcast %112 : vector<1x32xi1> to vector<8x32xi1>
    %114 = vector.broadcast %cst_35 : f32 to vector<8x32xf32>
    %115 = arith.select %113, %111, %114 : vector<8x32xi1>, vector<8x32xf32>
    %116 = tpu.concatenate %108, %115, %101 in 0 : vector<8x32xf32>, vector<8x32xf32>, vector<8x32xf32> -> vector<24x32xf32>
    %117 = arith.truncf %116 : vector<24x32xf32> to vector<24x32xbf16>
    %c0_36 = arith.constant 0 : index
    %c0_37 = arith.constant 0 : index
    %118 = vector.load %arg10[%c0_36, %c0_37] : memref<8x24xbf16, #tpu.memory_space<vmem>>, vector<8x24xbf16>
    %cst_38 = arith.constant dense<0.000000e+00> : vector<8x32xf32>
    %119 = tpu.matmul %118, %117, %cst_38 {dimension_numbers = #tpu.dot_dimension_numbers<[1], [0], [0], [1], [0, 0, 1, 1], [], []>} : vector<8x24xbf16>, vector<24x32xbf16>, vector<8x32xf32> -> vector<8x32xf32>
    %c0_39 = arith.constant 0 : index
    %c0_40 = arith.constant 0 : index
    %120 = vector.load %arg11[%c0_39, %c0_40] : memref<8x1xf32, #tpu.memory_space<vmem>>, vector<8x1xf32>
    %121 = vector.broadcast %120 : vector<8x1xf32> to vector<8x32xf32>
    %122 = arith.addf %119, %121 : vector<8x32xf32>
    %cst_41 = arith.constant 0.000000e+00 : f32
    %123 = vector.broadcast %cst_41 : f32 to vector<8x32xf32>
    %124 = arith.maximumf %122, %123 : vector<8x32xf32>
    %125 = arith.addf %124, %78 : vector<8x32xf32>
    %cst_42 = arith.constant 0.000000e+00 : f32
    %126 = vector.broadcast %cst_42 : f32 to vector<8x32xf32>
    %127 = arith.maximumf %125, %126 : vector<8x32xf32>
    %c0_43 = arith.constant 0 : index
    %c0_44 = arith.constant 0 : index
    %128 = vector.load %arg13[%c0_43, %c0_44] : memref<1x64xf32, #tpu.memory_space<vmem>>, vector<1x64xf32>
    %129 = vector.extract_strided_slice %127 {offsets = [0, 0], sizes = [1, 32], strides = [1, 1]} : vector<8x32xf32> to vector<1x32xf32>
    %130 = arith.truncf %129 : vector<1x32xf32> to vector<1x32xbf16>
    %c0_45 = arith.constant 0 : index
    %c0_46 = arith.constant 0 : index
    %c0_47 = arith.constant 0 : index
    %131 = vector.load %arg12[%c0_45, %c0_46, %c0_47] : memref<8x32x64xbf16, #tpu.memory_space<vmem>>, vector<1x32x64xbf16>
    %132 = vector.shape_cast %131 : vector<1x32x64xbf16> to vector<32x64xbf16>
    %cst_48 = arith.constant dense<0.000000e+00> : vector<1x64xf32>
    %133 = tpu.matmul %130, %132, %cst_48 {dimension_numbers = #tpu.dot_dimension_numbers<[1], [0], [0], [1], [0, 0, 1, 1], [], []>} : vector<1x32xbf16>, vector<32x64xbf16>, vector<1x64xf32> -> vector<1x64xf32>
    %134 = arith.addf %128, %133 : vector<1x64xf32>
    %135 = vector.extract_strided_slice %127 {offsets = [1, 0], sizes = [1, 32], strides = [1, 1]} : vector<8x32xf32> to vector<1x32xf32>
    %136 = arith.truncf %135 : vector<1x32xf32> to vector<1x32xbf16>
    %c1 = arith.constant 1 : index
    %c0_49 = arith.constant 0 : index
    %c0_50 = arith.constant 0 : index
    %137 = vector.load %arg12[%c1, %c0_49, %c0_50] : memref<8x32x64xbf16, #tpu.memory_space<vmem>>, vector<1x32x64xbf16>
    %138 = vector.shape_cast %137 : vector<1x32x64xbf16> to vector<32x64xbf16>
    %cst_51 = arith.constant dense<0.000000e+00> : vector<1x64xf32>
    %139 = tpu.matmul %136, %138, %cst_51 {dimension_numbers = #tpu.dot_dimension_numbers<[1], [0], [0], [1], [0, 0, 1, 1], [], []>} : vector<1x32xbf16>, vector<32x64xbf16>, vector<1x64xf32> -> vector<1x64xf32>
    %140 = arith.addf %134, %139 : vector<1x64xf32>
    %141 = vector.extract_strided_slice %127 {offsets = [2, 0], sizes = [1, 32], strides = [1, 1]} : vector<8x32xf32> to vector<1x32xf32>
    %142 = arith.truncf %141 : vector<1x32xf32> to vector<1x32xbf16>
    %c2 = arith.constant 2 : index
    %c0_52 = arith.constant 0 : index
    %c0_53 = arith.constant 0 : index
    %143 = vector.load %arg12[%c2, %c0_52, %c0_53] : memref<8x32x64xbf16, #tpu.memory_space<vmem>>, vector<1x32x64xbf16>
    %144 = vector.shape_cast %143 : vector<1x32x64xbf16> to vector<32x64xbf16>
    %cst_54 = arith.constant dense<0.000000e+00> : vector<1x64xf32>
    %145 = tpu.matmul %142, %144, %cst_54 {dimension_numbers = #tpu.dot_dimension_numbers<[1], [0], [0], [1], [0, 0, 1, 1], [], []>} : vector<1x32xbf16>, vector<32x64xbf16>, vector<1x64xf32> -> vector<1x64xf32>
    %146 = arith.addf %140, %145 : vector<1x64xf32>
    %147 = vector.extract_strided_slice %127 {offsets = [3, 0], sizes = [1, 32], strides = [1, 1]} : vector<8x32xf32> to vector<1x32xf32>
    %148 = arith.truncf %147 : vector<1x32xf32> to vector<1x32xbf16>
    %c3 = arith.constant 3 : index
    %c0_55 = arith.constant 0 : index
    %c0_56 = arith.constant 0 : index
    %149 = vector.load %arg12[%c3, %c0_55, %c0_56] : memref<8x32x64xbf16, #tpu.memory_space<vmem>>, vector<1x32x64xbf16>
    %150 = vector.shape_cast %149 : vector<1x32x64xbf16> to vector<32x64xbf16>
    %cst_57 = arith.constant dense<0.000000e+00> : vector<1x64xf32>
    %151 = tpu.matmul %148, %150, %cst_57 {dimension_numbers = #tpu.dot_dimension_numbers<[1], [0], [0], [1], [0, 0, 1, 1], [], []>} : vector<1x32xbf16>, vector<32x64xbf16>, vector<1x64xf32> -> vector<1x64xf32>
    %152 = arith.addf %146, %151 : vector<1x64xf32>
    %153 = vector.extract_strided_slice %127 {offsets = [4, 0], sizes = [1, 32], strides = [1, 1]} : vector<8x32xf32> to vector<1x32xf32>
    %154 = arith.truncf %153 : vector<1x32xf32> to vector<1x32xbf16>
    %c4 = arith.constant 4 : index
    %c0_58 = arith.constant 0 : index
    %c0_59 = arith.constant 0 : index
    %155 = vector.load %arg12[%c4, %c0_58, %c0_59] : memref<8x32x64xbf16, #tpu.memory_space<vmem>>, vector<1x32x64xbf16>
    %156 = vector.shape_cast %155 : vector<1x32x64xbf16> to vector<32x64xbf16>
    %cst_60 = arith.constant dense<0.000000e+00> : vector<1x64xf32>
    %157 = tpu.matmul %154, %156, %cst_60 {dimension_numbers = #tpu.dot_dimension_numbers<[1], [0], [0], [1], [0, 0, 1, 1], [], []>} : vector<1x32xbf16>, vector<32x64xbf16>, vector<1x64xf32> -> vector<1x64xf32>
    %158 = arith.addf %152, %157 : vector<1x64xf32>
    %159 = vector.extract_strided_slice %127 {offsets = [5, 0], sizes = [1, 32], strides = [1, 1]} : vector<8x32xf32> to vector<1x32xf32>
    %160 = arith.truncf %159 : vector<1x32xf32> to vector<1x32xbf16>
    %c5 = arith.constant 5 : index
    %c0_61 = arith.constant 0 : index
    %c0_62 = arith.constant 0 : index
    %161 = vector.load %arg12[%c5, %c0_61, %c0_62] : memref<8x32x64xbf16, #tpu.memory_space<vmem>>, vector<1x32x64xbf16>
    %162 = vector.shape_cast %161 : vector<1x32x64xbf16> to vector<32x64xbf16>
    %cst_63 = arith.constant dense<0.000000e+00> : vector<1x64xf32>
    %163 = tpu.matmul %160, %162, %cst_63 {dimension_numbers = #tpu.dot_dimension_numbers<[1], [0], [0], [1], [0, 0, 1, 1], [], []>} : vector<1x32xbf16>, vector<32x64xbf16>, vector<1x64xf32> -> vector<1x64xf32>
    %164 = arith.addf %158, %163 : vector<1x64xf32>
    %165 = vector.extract_strided_slice %127 {offsets = [6, 0], sizes = [1, 32], strides = [1, 1]} : vector<8x32xf32> to vector<1x32xf32>
    %166 = arith.truncf %165 : vector<1x32xf32> to vector<1x32xbf16>
    %c6 = arith.constant 6 : index
    %c0_64 = arith.constant 0 : index
    %c0_65 = arith.constant 0 : index
    %167 = vector.load %arg12[%c6, %c0_64, %c0_65] : memref<8x32x64xbf16, #tpu.memory_space<vmem>>, vector<1x32x64xbf16>
    %168 = vector.shape_cast %167 : vector<1x32x64xbf16> to vector<32x64xbf16>
    %cst_66 = arith.constant dense<0.000000e+00> : vector<1x64xf32>
    %169 = tpu.matmul %166, %168, %cst_66 {dimension_numbers = #tpu.dot_dimension_numbers<[1], [0], [0], [1], [0, 0, 1, 1], [], []>} : vector<1x32xbf16>, vector<32x64xbf16>, vector<1x64xf32> -> vector<1x64xf32>
    %170 = arith.addf %164, %169 : vector<1x64xf32>
    %171 = vector.extract_strided_slice %127 {offsets = [7, 0], sizes = [1, 32], strides = [1, 1]} : vector<8x32xf32> to vector<1x32xf32>
    %172 = arith.truncf %171 : vector<1x32xf32> to vector<1x32xbf16>
    %c7 = arith.constant 7 : index
    %c0_67 = arith.constant 0 : index
    %c0_68 = arith.constant 0 : index
    %173 = vector.load %arg12[%c7, %c0_67, %c0_68] : memref<8x32x64xbf16, #tpu.memory_space<vmem>>, vector<1x32x64xbf16>
    %174 = vector.shape_cast %173 : vector<1x32x64xbf16> to vector<32x64xbf16>
    %cst_69 = arith.constant dense<0.000000e+00> : vector<1x64xf32>
    %175 = tpu.matmul %172, %174, %cst_69 {dimension_numbers = #tpu.dot_dimension_numbers<[1], [0], [0], [1], [0, 0, 1, 1], [], []>} : vector<1x32xbf16>, vector<32x64xbf16>, vector<1x64xf32> -> vector<1x64xf32>
    %176 = arith.addf %170, %175 : vector<1x64xf32>
    %c0_70 = arith.constant 0 : index
    %c0_71 = arith.constant 0 : index
    %177 = vector.load %arg14[%c0_70, %c0_71] : memref<1x64xf32, #tpu.memory_space<vmem>>, vector<1x64xf32>
    tpu.vector_store %arg14[%c0_70, %c0_71], %176 {strides = array<i32>} : memref<1x64xf32, #tpu.memory_space<vmem>>, vector<1x64xf32>,
    return
  }
  func.func @transform_0(%arg0: i32) -> (i32, i32) {
    %c0_i32 = arith.constant 0 : i32
    %c0_i32_0 = arith.constant 0 : i32
    return %c0_i32, %arg0 : i32, i32
  }
  func.func @transform_1(%arg0: i32) -> (i32, i32) {
    %c0_i32 = arith.constant 0 : i32
    %c0_i32_0 = arith.constant 0 : i32
    %c0_i32_1 = arith.constant 0 : i32
    return %c0_i32, %c0_i32_0 : i32, i32
  }
  func.func @transform_2(%arg0: i32) -> (i32, i32) {
    %c0_i32 = arith.constant 0 : i32
    %c0_i32_0 = arith.constant 0 : i32
    %c0_i32_1 = arith.constant 0 : i32
    return %c0_i32, %c0_i32_0 : i32, i32
  }
  func.func @transform_3(%arg0: i32) -> (i32, i32) {
    %c0_i32 = arith.constant 0 : i32
    %c0_i32_0 = arith.constant 0 : i32
    %c0_i32_1 = arith.constant 0 : i32
    return %c0_i32, %c0_i32_0 : i32, i32
  }
  func.func @transform_4(%arg0: i32) -> (i32, i32) {
    %c0_i32 = arith.constant 0 : i32
    %c0_i32_0 = arith.constant 0 : i32
    %c0_i32_1 = arith.constant 0 : i32
    return %c0_i32, %c0_i32_0 : i32, i32
  }
  func.func @transform_5(%arg0: i32) -> (i32, i32) {
    %c0_i32 = arith.constant 0 : i32
    %c0_i32_0 = arith.constant 0 : i32
    %c0_i32_1 = arith.constant 0 : i32
    return %c0_i32, %c0_i32_0 : i32, i32
  }
  func.func @transform_6(%arg0: i32) -> (i32, i32) {
    %c0_i32 = arith.constant 0 : i32
    %c0_i32_0 = arith.constant 0 : i32
    %c0_i32_1 = arith.constant 0 : i32
    return %c0_i32, %c0_i32_0 : i32, i32
  }
  func.func @transform_7(%arg0: i32) -> (i32, i32) {
    %c0_i32 = arith.constant 0 : i32
    %c0_i32_0 = arith.constant 0 : i32
    %c0_i32_1 = arith.constant 0 : i32
    return %c0_i32, %c0_i32_0 : i32, i32
  }
  func.func @transform_8(%arg0: i32) -> (i32, i32) {
    %c0_i32 = arith.constant 0 : i32
    %c0_i32_0 = arith.constant 0 : i32
    %c0_i32_1 = arith.constant 0 : i32
    return %c0_i32, %c0_i32_0 : i32, i32
  }
  func.func @transform_9(%arg0: i32) -> (i32, i32) {
    %c0_i32 = arith.constant 0 : i32
    %c0_i32_0 = arith.constant 0 : i32
    %c0_i32_1 = arith.constant 0 : i32
    return %c0_i32, %c0_i32_0 : i32, i32
  }
  func.func @transform_10(%arg0: i32) -> (i32, i32) {
    %c0_i32 = arith.constant 0 : i32
    %c0_i32_0 = arith.constant 0 : i32
    %c0_i32_1 = arith.constant 0 : i32
    return %c0_i32, %c0_i32_0 : i32, i32
  }
  func.func @transform_11(%arg0: i32) -> (i32, i32, i32) {
    %c0_i32 = arith.constant 0 : i32
    %c0_i32_0 = arith.constant 0 : i32
    %c0_i32_1 = arith.constant 0 : i32
    %c0_i32_2 = arith.constant 0 : i32
    return %c0_i32, %c0_i32_0, %c0_i32_1 : i32, i32, i32
  }
  func.func @transform_12(%arg0: i32) -> (i32, i32) {
    %c0_i32 = arith.constant 0 : i32
    %c0_i32_0 = arith.constant 0 : i32
    %c0_i32_1 = arith.constant 0 : i32
    return %c0_i32, %c0_i32_0 : i32, i32
  }
  func.func @transform_13(%arg0: i32) -> (i32, i32) {
    %c0_i32 = arith.constant 0 : i32
    %c0_i32_0 = arith.constant 0 : i32
    return %arg0, %c0_i32 : i32, i32
  }
}

</mosaic_0001>

<llo_original>
// kernel: tpu_custom_call.1
$region0: #{tpu_custom_call.1}
  #allocation0 [shape = 'u32[]', space=smem, size = 0x4, offset = 0x4, fixed_abs, tag = 'smem constant byte address 0x4 - core index']
  #allocation1 [shape = 'u32[72,128]{1,0:T(1,128)}', space=vmem, size = 0x9000, scoped, tag = 'internal scratch']
  %s0 = inlined_call_operand.vmem [shape: f32[5,32], index: 0, kind: input, shape index: {}]
  %s1 = inlined_call_operand.vmem [shape: bf16[8,15], index: 1, kind: input, shape index: {}]
  %s2 = inlined_call_operand.vmem [shape: f32[8,1], index: 2, kind: input, shape index: {}]
  %s3 = inlined_call_operand.vmem [shape: bf16[8,24], index: 3, kind: input, shape index: {}]
  %s4 = inlined_call_operand.vmem [shape: f32[8,1], index: 4, kind: input, shape index: {}]
  %s5 = inlined_call_operand.vmem [shape: bf16[8,5], index: 5, kind: input, shape index: {}]
  %s6 = inlined_call_operand.vmem [shape: f32[8,1], index: 6, kind: input, shape index: {}]
  %s7 = inlined_call_operand.vmem [shape: bf16[8,24], index: 7, kind: input, shape index: {}]
  %s8 = inlined_call_operand.vmem [shape: f32[8,1], index: 8, kind: input, shape index: {}]
  %s9 = inlined_call_operand.vmem [shape: bf16[8,24], index: 9, kind: input, shape index: {}]
  %s10 = inlined_call_operand.vmem [shape: f32[8,1], index: 10, kind: input, shape index: {}]
  %s11 = inlined_call_operand.hbm [shape: bf16[8,32,64], index: 11, kind: input, shape index: {}]
  %s12 = inlined_call_operand.vmem [shape: f32[1,64], index: 12, kind: input, shape index: {}]
  %s13 = inlined_call_operand.hbm [shape: f32[1,64], index: 13, kind: output, shape index: {}]
  %s14 = sld [smem:[#allocation0]]
  $region66: #{tpu_custom_call.1} parent=0
    _
  %s16 = ssub.s32 1, %s14
  %s17 = scalar_select 0, %s16, %s14
  $region1: #{tpu_custom_call.1} parent=0
    #allocation2 [shape = 'u8[65536]{0}', space=vmem, size = 0x10000, scoped, tag = 'input window, operand 11, single buffered']
    #allocation3 [shape = 's32[1]{0}', space=sflag, size = 0x4, scoped, tag = 'scoped memory for tpu_custom_call.1']
    #allocation4 [shape = 's32[1]{0}', space=sflag, size = 0x4, scoped, tag = 'scoped memory for tpu_custom_call.1']
    #allocation5 [shape = 'u8[512]{0}', space=vmem, size = 0x400, scoped, tag = 'output window, operand 0, single buffered']
    %18 = vsyncpa [#allocation3], 0
    %19 = vsyncpa [#allocation4], 0
    // Predicated region
    $region2: #{tpu_custom_call.1} parent=1 // pred_check
      _
    $region3: #{tpu_custom_call.1} parent=1 // pred_check_branch
      %21 = sbr.rel (0) target = $region5
    $region4: #{tpu_custom_call.1} parent=1 // pred_region
      _
    $region5: #{tpu_custom_call.1} parent=1 // pred_fallthru
      _
    // Predicated region
    $region6: #{tpu_custom_call.1} parent=1 // pred_check
      _
    $region7: #{tpu_custom_call.1} parent=1 // pred_check_branch
      %23 = sbr.rel (0) target = $region9
    $region8: #{tpu_custom_call.1} parent=1 // pred_region
      _
    $region9: #{tpu_custom_call.1} parent=1 // pred_fallthru
      _
    // Predicated region
    $region10: #{tpu_custom_call.1} parent=1 // pred_check
      _
    $region11: #{tpu_custom_call.1} parent=1 // pred_check_branch
      %25 = sbr.rel (0) target = $region13
    $region12: #{tpu_custom_call.1} parent=1 // pred_region
      _
    $region13: #{tpu_custom_call.1} parent=1 // pred_fallthru
      _
    // Predicated region
    $region14: #{tpu_custom_call.1} parent=1 // pred_check
      _
    $region15: #{tpu_custom_call.1} parent=1 // pred_check_branch
      %27 = sbr.rel (0) target = $region17
    $region16: #{tpu_custom_call.1} parent=1 // pred_region
      _
    $region17: #{tpu_custom_call.1} parent=1 // pred_fallthru
      _
    // Predicated region
    $region18: #{tpu_custom_call.1} parent=1 // pred_check
      _
    $region19: #{tpu_custom_call.1} parent=1 // pred_check_branch
      %29 = sbr.rel (0) target = $region21
    $region20: #{tpu_custom_call.1} parent=1 // pred_region
      _
    $region21: #{tpu_custom_call.1} parent=1 // pred_fallthru
      _
    // Predicated region
    $region22: #{tpu_custom_call.1} parent=1 // pred_check
      _
    $region23: #{tpu_custom_call.1} parent=1 // pred_check_branch
      %31 = sbr.rel (0) target = $region25
    $region24: #{tpu_custom_call.1} parent=1 // pred_region
      _
    $region25: #{tpu_custom_call.1} parent=1 // pred_fallthru
      _
    // Predicated region
    $region26: #{tpu_custom_call.1} parent=1 // pred_check
      _
    $region27: #{tpu_custom_call.1} parent=1 // pred_check_branch
      %33 = sbr.rel (0) target = $region29
    $region28: #{tpu_custom_call.1} parent=1 // pred_region
      _
    $region29: #{tpu_custom_call.1} parent=1 // pred_fallthru
      _
    // Predicated region
    $region30: #{tpu_custom_call.1} parent=1 // pred_check
      _
    $region31: #{tpu_custom_call.1} parent=1 // pred_check_branch
      %35 = sbr.rel (0) target = $region33
    $region32: #{tpu_custom_call.1} parent=1 // pred_region
      _
    $region33: #{tpu_custom_call.1} parent=1 // pred_fallthru
      _
    // Predicated region
    $region34: #{tpu_custom_call.1} parent=1 // pred_check
      _
    $region35: #{tpu_custom_call.1} parent=1 // pred_check_branch
      %37 = sbr.rel (0) target = $region37
    $region36: #{tpu_custom_call.1} parent=1 // pred_region
      _
    $region37: #{tpu_custom_call.1} parent=1 // pred_fallthru
      _
    // Predicated region
    $region38: #{tpu_custom_call.1} parent=1 // pred_check
      _
    $region39: #{tpu_custom_call.1} parent=1 // pred_check_branch
      %39 = sbr.rel (0) target = $region41
    $region40: #{tpu_custom_call.1} parent=1 // pred_region
      _
    $region41: #{tpu_custom_call.1} parent=1 // pred_fallthru
      _
    // Predicated region
    $region42: #{tpu_custom_call.1} parent=1 // pred_check
      _
    $region43: #{tpu_custom_call.1} parent=1 // pred_check_branch
      %41 = sbr.rel (0) target = $region45
    $region44: #{tpu_custom_call.1} parent=1 // pred_region
      _
    $region45: #{tpu_custom_call.1} parent=1 // pred_fallthru
      _
    // Predicated region
    $region46: #{tpu_custom_call.1} parent=1 // pred_check
      _
    $region47: #{tpu_custom_call.1} parent=1 // pred_check_branch
      %43 = sbr.rel (0) target = $region49
    $region48: #{tpu_custom_call.1} parent=1 // pred_region
      %45 = vsyncadd [#allocation3], 0
      %s46 = sshll.u32 %s11, 4
      %s47 = int_to_ptr.hbm [resolvable:$true] %s46
      %s48 = sshll.u32 [#allocation2], 4
      %s49 = int_to_ptr.vmem [resolvable:$true] %s48
      %54 = dma.hbm_to_vmem [thread:$0]  %s47, 2048, %s49, [#allocation3], 64, 64, 4
    $region49: #{tpu_custom_call.1} parent=1 // pred_fallthru
      _
    // Predicated region
    $region50: #{tpu_custom_call.1} parent=1 // pred_check
      _
    $region51: #{tpu_custom_call.1} parent=1 // pred_check_branch
      %56 = sbr.rel (0) target = $region53
    $region52: #{tpu_custom_call.1} parent=1 // pred_region
      _
    $region53: #{tpu_custom_call.1} parent=1 // pred_fallthru
      _
    // Predicated region
    $region54: #{tpu_custom_call.1} parent=1 // pred_check
      _
    $region55: #{tpu_custom_call.1} parent=1 // pred_check_branch
      %58 = sbr.rel (0) target = $region57
    $region56: #{tpu_custom_call.1} parent=1 // pred_region
      %60 = dma.done [#allocation3], 2048
    $region57: #{tpu_custom_call.1} parent=1 // pred_fallthru
      _
    %v62 = vld [vmem:[%s0] sm:$0x1f]
    %v63 = vlaneseq
    %v64 = vand.u32 %v63, 127
    %vm65 = vcmp.lt.s32.totalorder %v64, 0
    %v66 = vsub.s32 0, %v64
    %v67 = vsel %vm65, %v66, %v64
    %v68 = vshrl.u32 %v67, 4
    %v69 = vand.u32 %v67, 15
    %v70 = vsub.s32 0, %v69
    %v71 = vsel %vm65, %v70, %v69
    %vm72 = vcmp.ne.s32.totalorder %v71, 0
    %vm73 = vcmp.lt.s32.totalorder %v71, 0
    %vm74 = vmand %vm73, %vm72
    %v75 = vadd.s32 %v71, 16
    %v76 = vsel %vm74, %v75, %v71
    %vm77 = vcmp.ge.s32.totalorder %v76, 1
    %vm78 = vcmp.ge.s32.totalorder %v76, 2
    %vm79 = vcmp.ge.s32.totalorder %v76, 4
    %v80 = vld [vmem:[%s5] sm:$0xf]
    %v81 = vpack.c.bf16 %v62, %v62
    %v82 = vld [vmem:[%s6] sm:$0xff]
    %84 = vset.pattern.permute.xlu0 0
    %85 = vperm.xlu0 %84, %v82
    %v86 = vpop.permute.xlu0 %85
    %vm88 = vcmask 39936
    %v90 = vsel %vm88, %v80, 0
    %vm92 = vcmask 1041408
    %vm93 = vcmask 1042432
    %v94 = vsel %vm92, 4294967295, 65535
    %v95 = vsel %vm93, %v94, 0
    %v97 = vand.u32 %v81, %v95
    %99 = vmatpush.bf16.msra.mxu0 0
    %100 = vmatpush.bf16.msra.mxu0 0
    %101 = vmatpush.bf16.msra.mxu0 0
    %102 = vmatpush.bf16.msra.mxu0 0
    %103 = vmatpush.bf16.msra.mxu0 0
    %104 = vmatpush.bf16.msra.mxu0 0
    %105 = vmatpush.bf16.msra.mxu0 0
    %106 = vmatpush.bf16.msra.mxu0 %v97
    %107 = vmatmul.bf16.gmra.mxu0 %v90
    %v108 = vpop.f32.mrf.mxu0
    %v109 = vadd.f32 %v86, %v108
    %v110 = vpop.f32.mrf.mxu0
    %111 = vdwg.mxu0
    %113 = vrot.lane.b32.xlu0 %v62, 98
    %v114 = vpop.permute.xlu0 %113
    %116 = vrot.lane.b32.xlu0 %v62, 2
    %v117 = vpop.permute.xlu0 %116
    %vm119 = vcmask 15360
    %v120 = vsel %vm119, %v114, %v117
    %v121 = vsel %vm78, 1, 0
    %vm122 = vcmp.eq.s32.totalorder %v121, 1
    %v123 = vsel %vm122, %v120, 0.0
    %124 = vrot.lane.b32.xlu0 %v62, 97
    %v125 = vpop.permute.xlu0 %124
    %127 = vrot.lane.b32.xlu0 %v62, 1
    %v128 = vpop.permute.xlu0 %127
    %vm130 = vcmask 7168
    %v131 = vsel %vm130, %v125, %v128
    %v132 = vsel %vm77, 1, 0
    %vm133 = vcmp.eq.s32.totalorder %v132, 1
    %v134 = vsel %vm133, %v131, 0.0
    %v136 = vrot.slane %v134, 3
    %v138 = vrot.slane %v62, 6
    %vm140 = vcmask 1044480
    %v141 = vsel %vm140, %v123, %v136
    %v142 = vsel %vm92, %v136, %v138
    %v143 = vpack.c.bf16 %v142, %v141
    %v144 = vld [vmem:[%s1] sm:$0xf]
    %v145 = vld [vmem:[%s2] sm:$0xff]
    %147 = vset.pattern.permute.xlu0 0
    %148 = vperm.xlu0 %147, %v145
    %v149 = vpop.permute.xlu0 %148
    %vm151 = vcmask 121856
    %v153 = vsel %vm151, %v144, 0
    %vm155 = vcmask 1046528
    %vm156 = vcmask 1047552
    %v157 = vsel %vm155, 4294967295, 65535
    %v158 = vsel %vm156, %v157, 0
    %v160 = vand.u32 %v143, %v158
    %162 = vmatpush.bf16.msra.mxu0 0
    %163 = vmatpush.bf16.msra.mxu0 0
    %164 = vmatpush.bf16.msra.mxu0 0
    %165 = vmatpush.bf16.msra.mxu0 0
    %166 = vmatpush.bf16.msra.mxu0 0
    %167 = vmatpush.bf16.msra.mxu0 0
    %168 = vmatpush.bf16.msra.mxu0 0
    %169 = vmatpush.bf16.msra.mxu0 %v160
    %170 = vmatmul.bf16.gmra.mxu0 %v153
    %v171 = vpop.f32.mrf.mxu0
    %v172 = vadd.f32 %v149, %v171
    %v173 = vpop.f32.mrf.mxu0
    %174 = vdwg.mxu0
    %v175 = vmax.f32 %v172, 0.0
    %177 = vrot.lane.b32.xlu0 %v175, 98
    %v178 = vpop.permute.xlu0 %177
    %180 = vrot.lane.b32.xlu0 %v175, 2
    %v181 = vpop.permute.xlu0 %180
    %v183 = vsel %vm119, %v178, %v181
    %v184 = vsel %vm122, %v183, 0.0
    %185 = vrot.lane.b32.xlu0 %v175, 97
    %v186 = vpop.permute.xlu0 %185
    %188 = vrot.lane.b32.xlu0 %v175, 1
    %v189 = vpop.permute.xlu0 %188
    %v191 = vsel %vm130, %v186, %v189
    %v192 = vsel %vm133, %v191, 0.0
    %v193 = vpack.c.bf16 %v192, %v184
    %v194 = vpack.c.bf16 %v175, %v175
    %v195 = vld [vmem:[%s3] sm:$0xf]
    %v196 = vld [vmem:[%s4] sm:$0xff]
    %198 = vset.pattern.permute.xlu0 0
    %199 = vperm.xlu0 %198, %v196
    %v200 = vpop.permute.xlu0 %199
    %vm202 = vcmask 195584
    %v204 = vsel %vm202, %v195, 0
    %vm206 = vcmask 1043456
    %v208 = vsel %vm206, %v194, 0
    %210 = vmatpush.bf16.msra.mxu0 0
    %211 = vmatpush.bf16.msra.mxu0 0
    %212 = vmatpush.bf16.msra.mxu0 0
    %213 = vmatpush.bf16.msra.mxu0 0
    %214 = vmatpush.bf16.msra.mxu0 0
    %215 = vmatpush.bf16.msra.mxu0 0
    %216 = vmatpush.bf16.msra.mxu0 %v208
    %217 = vmatpush.bf16.msra.mxu0 %v193
    %218 = vmatmul.bf16.gmra.mxu0 %v204
    %v219 = vpop.f32.mrf.mxu0
    %v220 = vadd.f32 %v200, %v219
    %v221 = vpop.f32.mrf.mxu0
    %222 = vdwg.mxu0
    %v223 = vmax.f32 %v220, 0.0
    %v224 = vadd.f32 %v223, %v109
    %v225 = vmax.f32 %v224, 0.0
    %227 = vrot.lane.b32.xlu0 %v225, 100
    %v228 = vpop.permute.xlu0 %227
    %230 = vrot.lane.b32.xlu0 %v225, 4
    %v231 = vpop.permute.xlu0 %230
    %vm233 = vcmask 31744
    %v234 = vsel %vm233, %v228, %v231
    %v235 = vsel %vm79, 1, 0
    %vm236 = vcmp.eq.s32.totalorder %v235, 1
    %v237 = vsel %vm236, %v234, 0.0
    %238 = vrot.lane.b32.xlu0 %v225, 98
    %v239 = vpop.permute.xlu0 %238
    %241 = vrot.lane.b32.xlu0 %v225, 2
    %v242 = vpop.permute.xlu0 %241
    %v244 = vsel %vm119, %v239, %v242
    %v245 = vsel %vm122, %v244, 0.0
    %v246 = vpack.c.bf16 %v245, %v237
    %v247 = vpack.c.bf16 %v225, %v225
    %v248 = vld [vmem:[%s7] sm:$0xf]
    %v249 = vld [vmem:[%s8] sm:$0xff]
    %251 = vset.pattern.permute.xlu0 0
    %252 = vperm.xlu0 %251, %v249
    %v253 = vpop.permute.xlu0 %252
    %v256 = vsel %vm202, %v248, 0
    %v259 = vsel %vm206, %v247, 0
    %261 = vmatpush.bf16.msra.mxu0 0
    %262 = vmatpush.bf16.msra.mxu0 0
    %263 = vmatpush.bf16.msra.mxu0 0
    %264 = vmatpush.bf16.msra.mxu0 0
    %265 = vmatpush.bf16.msra.mxu0 0
    %266 = vmatpush.bf16.msra.mxu0 0
    %267 = vmatpush.bf16.msra.mxu0 %v259
    %268 = vmatpush.bf16.msra.mxu0 %v246
    %269 = vmatmul.bf16.gmra.mxu0 %v256
    %v270 = vpop.f32.mrf.mxu0
    %v271 = vadd.f32 %v253, %v270
    %v272 = vpop.f32.mrf.mxu0
    %273 = vdwg.mxu0
    %v274 = vmax.f32 %v271, 0.0
    %276 = vrot.lane.b32.xlu0 %v274, 100
    %v277 = vpop.permute.xlu0 %276
    %279 = vrot.lane.b32.xlu0 %v274, 4
    %v280 = vpop.permute.xlu0 %279
    %v282 = vsel %vm233, %v277, %v280
    %v283 = vsel %vm236, %v282, 0.0
    %284 = vrot.lane.b32.xlu0 %v274, 98
    %v285 = vpop.permute.xlu0 %284
    %287 = vrot.lane.b32.xlu0 %v274, 2
    %v288 = vpop.permute.xlu0 %287
    %v290 = vsel %vm119, %v285, %v288
    %v291 = vsel %vm122, %v290, 0.0
    %v292 = vpack.c.bf16 %v291, %v283
    %v293 = vpack.c.bf16 %v274, %v274
    %v294 = vld [vmem:[%s9] sm:$0xf]
    %v295 = vld [vmem:[%s10] sm:$0xff]
    %297 = vset.pattern.permute.xlu0 0
    %298 = vperm.xlu0 %297, %v295
    %v299 = vpop.permute.xlu0 %298
    %v302 = vsel %vm202, %v294, 0
    %v305 = vsel %vm206, %v293, 0
    %307 = vmatpush.bf16.msra.mxu0 0
    %308 = vmatpush.bf16.msra.mxu0 0
    %309 = vmatpush.bf16.msra.mxu0 0
    %310 = vmatpush.bf16.msra.mxu0 0
    %311 = vmatpush.bf16.msra.mxu0 0
    %312 = vmatpush.bf16.msra.mxu0 0
    %313 = vmatpush.bf16.msra.mxu0 %v305
    %314 = vmatpush.bf16.msra.mxu0 %v292
    %315 = vmatmul.bf16.gmra.mxu0 %v302
    %v316 = vpop.f32.mrf.mxu0
    %v317 = vadd.f32 %v299, %v316
    %v318 = vpop.f32.mrf.mxu0
    %319 = vdwg.mxu0
    %v320 = vmax.f32 %v317, 0.0
    %v321 = vadd.f32 %v320, %v225
    %v322 = vmax.f32 %v321, 0.0
    %v323 = vld [vmem:[%s12] sm:$0x1]
    %v324 = vpack.c.bf16 %v322, %v322
    %v325 = vld [vmem:[#allocation2] sm:$0xf]
    %v326 = vld [vmem:[#allocation2 + $0x4] sm:$0xf]
    %v327 = vld [vmem:[#allocation2 + $0x8] sm:$0xf]
    %v328 = vld [vmem:[#allocation2 + $0xc] sm:$0xf]
    %v333 = vunpack.c.l.b16 %v325
    %v334 = vunpack.c.l.b16 %v326
    %v335 = vunpack.c.l.b16 %v327
    %v336 = vunpack.c.l.b16 %v328
    %v337 = vpack.c.b16 %v334, %v333
    %v338 = vpack.c.b16 %v336, %v335
    %vm341 = vcmask 261120
    %v343 = vsel %vm341, %v324, 0
    %345 = vmatpush.bf16.msra.mxu0 0
    %346 = vmatpush.bf16.msra.mxu0 0
    %347 = vmatpush.bf16.msra.mxu0 0
    %348 = vmatpush.bf16.msra.mxu0 0
    %349 = vmatpush.bf16.msra.mxu0 0
    %350 = vmatpush.bf16.msra.mxu0 0
    %351 = vmatpush.bf16.msra.mxu0 %v338
    %352 = vmatpush.bf16.msra.mxu0 %v337
    %353 = vmatmul.bf16.gmra.mxu0 %v343
    %v354 = vpop.f32.mrf.mxu0
    %v355 = vadd.f32 0.0, %v354
    %v356 = vpop.f32.mrf.mxu0
    %357 = vdwg.mxu0
    %v358 = vadd.f32 %v323, %v355
    %s359 = scalar_lea.vmem [#allocation2], 16
    %v360 = vld [vmem:[%s359] sm:$0xf]
    %v361 = vld [vmem:[%s359 + $0x4] sm:$0xf]
    %v362 = vld [vmem:[%s359 + $0x8] sm:$0xf]
    %v363 = vld [vmem:[%s359 + $0xc] sm:$0xf]
    %v364 = vshrl.u32 %v324, 16
    %v370 = vunpack.c.l.b16 %v360
    %v371 = vunpack.c.l.b16 %v361
    %v372 = vunpack.c.l.b16 %v362
    %v373 = vunpack.c.l.b16 %v363
    %v374 = vpack.c.b16 %v371, %v370
    %v375 = vpack.c.b16 %v373, %v372
    %v379 = vsel %vm341, %v364, 0
    %381 = vmatpush.bf16.msra.mxu0 0
    %382 = vmatpush.bf16.msra.mxu0 0
    %383 = vmatpush.bf16.msra.mxu0 0
    %384 = vmatpush.bf16.msra.mxu0 0
    %385 = vmatpush.bf16.msra.mxu0 0
    %386 = vmatpush.bf16.msra.mxu0 0
    %387 = vmatpush.bf16.msra.mxu0 %v375
    %388 = vmatpush.bf16.msra.mxu0 %v374
    %389 = vmatmul.bf16.gmra.mxu0 %v379
    %v390 = vpop.f32.mrf.mxu0
    %v391 = vadd.f32 0.0, %v390
    %v392 = vpop.f32.mrf.mxu0
    %393 = vdwg.mxu0
    %v394 = vadd.f32 %v358, %v391
    %s395 = scalar_lea.vmem [#allocation2], 32
    %v396 = vld [vmem:[%s395] sm:$0xf]
    %v397 = vld [vmem:[%s395 + $0x4] sm:$0xf]
    %v398 = vld [vmem:[%s395 + $0x8] sm:$0xf]
    %v399 = vld [vmem:[%s395 + $0xc] sm:$0xf]
    %v401 = vrot.slane %v324, 1
    %v406 = vunpack.c.l.b16 %v396
    %v407 = vunpack.c.l.b16 %v397
    %v408 = vunpack.c.l.b16 %v398
    %v409 = vunpack.c.l.b16 %v399
    %v410 = vpack.c.b16 %v407, %v406
    %v411 = vpack.c.b16 %v409, %v408
    %v415 = vsel %vm341, %v401, 0
    %417 = vmatpush.bf16.msra.mxu0 0
    %418 = vmatpush.bf16.msra.mxu0 0
    %419 = vmatpush.bf16.msra.mxu0 0
    %420 = vmatpush.bf16.msra.mxu0 0
    %421 = vmatpush.bf16.msra.mxu0 0
    %422 = vmatpush.bf16.msra.mxu0 0
    %423 = vmatpush.bf16.msra.mxu0 %v411
    %424 = vmatpush.bf16.msra.mxu0 %v410
    %425 = vmatmul.bf16.gmra.mxu0 %v415
    %v426 = vpop.f32.mrf.mxu0
    %v427 = vadd.f32 0.0, %v426
    %v428 = vpop.f32.mrf.mxu0
    %429 = vdwg.mxu0
    %v430 = vadd.f32 %v394, %v427
    %s431 = scalar_lea.vmem [#allocation2], 48
    %v432 = vld [vmem:[%s431] sm:$0xf]
    %v433 = vld [vmem:[%s431 + $0x4] sm:$0xf]
    %v434 = vld [vmem:[%s431 + $0x8] sm:$0xf]
    %v435 = vld [vmem:[%s431 + $0xc] sm:$0xf]
    %v436 = vrot.slane %v364, 1
    %v441 = vunpack.c.l.b16 %v432
    %v442 = vunpack.c.l.b16 %v433
    %v443 = vunpack.c.l.b16 %v434
    %v444 = vunpack.c.l.b16 %v435
    %v445 = vpack.c.b16 %v442, %v441
    %v446 = vpack.c.b16 %v444, %v443
    %v450 = vsel %vm341, %v436, 0
    %452 = vmatpush.bf16.msra.mxu0 0
    %453 = vmatpush.bf16.msra.mxu0 0
    %454 = vmatpush.bf16.msra.mxu0 0
    %455 = vmatpush.bf16.msra.mxu0 0
    %456 = vmatpush.bf16.msra.mxu0 0
    %457 = vmatpush.bf16.msra.mxu0 0
    %458 = vmatpush.bf16.msra.mxu0 %v446
    %459 = vmatpush.bf16.msra.mxu0 %v445
    %460 = vmatmul.bf16.gmra.mxu0 %v450
    %v461 = vpop.f32.mrf.mxu0
    %v462 = vadd.f32 0.0, %v461
    %v463 = vpop.f32.mrf.mxu0
    %464 = vdwg.mxu0
    %v465 = vadd.f32 %v430, %v462
    %s466 = scalar_lea.vmem [#allocation2], 64
    %v467 = vld [vmem:[%s466] sm:$0xf]
    %v468 = vld [vmem:[%s466 + $0x4] sm:$0xf]
    %v469 = vld [vmem:[%s466 + $0x8] sm:$0xf]
    %v470 = vld [vmem:[%s466 + $0xc] sm:$0xf]
    %v471 = vrot.slane %v324, 2
    %v476 = vunpack.c.l.b16 %v467
    %v477 = vunpack.c.l.b16 %v468
    %v478 = vunpack.c.l.b16 %v469
    %v479 = vunpack.c.l.b16 %v470
    %v480 = vpack.c.b16 %v477, %v476
    %v481 = vpack.c.b16 %v479, %v478
    %v485 = vsel %vm341, %v471, 0
    %487 = vmatpush.bf16.msra.mxu0 0
    %488 = vmatpush.bf16.msra.mxu0 0
    %489 = vmatpush.bf16.msra.mxu0 0
    %490 = vmatpush.bf16.msra.mxu0 0
    %491 = vmatpush.bf16.msra.mxu0 0
    %492 = vmatpush.bf16.msra.mxu0 0
    %493 = vmatpush.bf16.msra.mxu0 %v481
    %494 = vmatpush.bf16.msra.mxu0 %v480
    %495 = vmatmul.bf16.gmra.mxu0 %v485
    %v496 = vpop.f32.mrf.mxu0
    %v497 = vadd.f32 0.0, %v496
    %v498 = vpop.f32.mrf.mxu0
    %499 = vdwg.mxu0
    %v500 = vadd.f32 %v465, %v497
    %s501 = scalar_lea.vmem [#allocation2], 80
    %v502 = vld [vmem:[%s501] sm:$0xf]
    %v503 = vld [vmem:[%s501 + $0x4] sm:$0xf]
    %v504 = vld [vmem:[%s501 + $0x8] sm:$0xf]
    %v505 = vld [vmem:[%s501 + $0xc] sm:$0xf]
    %v506 = vrot.slane %v364, 2
    %v511 = vunpack.c.l.b16 %v502
    %v512 = vunpack.c.l.b16 %v503
    %v513 = vunpack.c.l.b16 %v504
    %v514 = vunpack.c.l.b16 %v505
    %v515 = vpack.c.b16 %v512, %v511
    %v516 = vpack.c.b16 %v514, %v513
    %v520 = vsel %vm341, %v506, 0
    %522 = vmatpush.bf16.msra.mxu0 0
    %523 = vmatpush.bf16.msra.mxu0 0
    %524 = vmatpush.bf16.msra.mxu0 0
    %525 = vmatpush.bf16.msra.mxu0 0
    %526 = vmatpush.bf16.msra.mxu0 0
    %527 = vmatpush.bf16.msra.mxu0 0
    %528 = vmatpush.bf16.msra.mxu0 %v516
    %529 = vmatpush.bf16.msra.mxu0 %v515
    %530 = vmatmul.bf16.gmra.mxu0 %v520
    %v531 = vpop.f32.mrf.mxu0
    %v532 = vadd.f32 0.0, %v531
    %v533 = vpop.f32.mrf.mxu0
    %534 = vdwg.mxu0
    %v535 = vadd.f32 %v500, %v532
    %s536 = scalar_lea.vmem [#allocation2], 96
    %v537 = vld [vmem:[%s536] sm:$0xf]
    %v538 = vld [vmem:[%s536 + $0x4] sm:$0xf]
    %v539 = vld [vmem:[%s536 + $0x8] sm:$0xf]
    %v540 = vld [vmem:[%s536 + $0xc] sm:$0xf]
    %v541 = vrot.slane %v324, 3
    %v546 = vunpack.c.l.b16 %v537
    %v547 = vunpack.c.l.b16 %v538
    %v548 = vunpack.c.l.b16 %v539
    %v549 = vunpack.c.l.b16 %v540
    %v550 = vpack.c.b16 %v547, %v546
    %v551 = vpack.c.b16 %v549, %v548
    %v555 = vsel %vm341, %v541, 0
    %557 = vmatpush.bf16.msra.mxu0 0
    %558 = vmatpush.bf16.msra.mxu0 0
    %559 = vmatpush.bf16.msra.mxu0 0
    %560 = vmatpush.bf16.msra.mxu0 0
    %561 = vmatpush.bf16.msra.mxu0 0
    %562 = vmatpush.bf16.msra.mxu0 0
    %563 = vmatpush.bf16.msra.mxu0 %v551
    %564 = vmatpush.bf16.msra.mxu0 %v550
    %565 = vmatmul.bf16.gmra.mxu0 %v555
    %v566 = vpop.f32.mrf.mxu0
    %v567 = vadd.f32 0.0, %v566
    %v568 = vpop.f32.mrf.mxu0
    %569 = vdwg.mxu0
    %v570 = vadd.f32 %v535, %v567
    %s571 = scalar_lea.vmem [#allocation2], 112
    %v572 = vld [vmem:[%s571] sm:$0xf]
    %v573 = vld [vmem:[%s571 + $0x4] sm:$0xf]
    %v574 = vld [vmem:[%s571 + $0x8] sm:$0xf]
    %v575 = vld [vmem:[%s571 + $0xc] sm:$0xf]
    %v576 = vrot.slane %v364, 3
    %v581 = vunpack.c.l.b16 %v572
    %v582 = vunpack.c.l.b16 %v573
    %v583 = vunpack.c.l.b16 %v574
    %v584 = vunpack.c.l.b16 %v575
    %v585 = vpack.c.b16 %v582, %v581
    %v586 = vpack.c.b16 %v584, %v583
    %v590 = vsel %vm341, %v576, 0
    %592 = vmatpush.bf16.msra.mxu0 0
    %593 = vmatpush.bf16.msra.mxu0 0
    %594 = vmatpush.bf16.msra.mxu0 0
    %595 = vmatpush.bf16.msra.mxu0 0
    %596 = vmatpush.bf16.msra.mxu0 0
    %597 = vmatpush.bf16.msra.mxu0 0
    %598 = vmatpush.bf16.msra.mxu0 %v586
    %599 = vmatpush.bf16.msra.mxu0 %v585
    %600 = vmatmul.bf16.gmra.mxu0 %v590
    %v601 = vpop.f32.mrf.mxu0
    %v602 = vadd.f32 0.0, %v601
    %v603 = vpop.f32.mrf.mxu0
    %604 = vdwg.mxu0
    %v605 = vadd.f32 %v570, %v602
    %vm606 = vcmask 516096
    %607 = vst.msk [vmem:[#allocation5] sm:$0x1] %vm606, %v605
    // Predicated region
    $region58: #{tpu_custom_call.1} parent=1 // pred_check
      _
    $region59: #{tpu_custom_call.1} parent=1 // pred_check_branch
      %609 = sbr.rel (0) target = $region61
    $region60: #{tpu_custom_call.1} parent=1 // pred_region
      %611 = vsyncadd [#allocation4], 0
      %s613 = sshll.u32 [#allocation5], 4
      %s614 = int_to_ptr.vmem [resolvable:$true] %s613
      %s615 = sshll.u32 %s13, 4
      %s616 = int_to_ptr.hbm [resolvable:$true] %s615
      %618 = dma.vmem_to_hbm [thread:$0]  %s614, 16, %s616, [#allocation4]
    $region61: #{tpu_custom_call.1} parent=1 // pred_fallthru
      _
    // Predicated region
    $region62: #{tpu_custom_call.1} parent=1 // pred_check
      _
    $region63: #{tpu_custom_call.1} parent=1 // pred_check_branch
      %620 = sbr.rel (0) target = $region65
    $region64: #{tpu_custom_call.1} parent=1 // pred_region
      %622 = dma.done [#allocation4], 16
    $region65: #{tpu_custom_call.1} parent=1 // pred_fallthru
      _
    %623 = vsyncpa [#allocation3], 1
    %624 = vsyncpa [#allocation4], 1

</llo_original>
